<compile_context>
chip_gen: v7x
topology: tpu7x:2x2x1
jax: 0.10.0
libtpu: 0.0.40
codegen_flags: <defaults>
</compile_context>

<pallas_src>
import functools

import jax
import jax.numpy as jnp
from jax import lax
from jax.experimental import pallas as pl
from jax.experimental.pallas import tpu as pltpu

POOL_SIZES = (5, 9, 13)


def _pad_value(dtype):
    if jnp.issubdtype(dtype, jnp.floating):
        return jnp.array(-jnp.inf, dtype=dtype)
    return jnp.array(jnp.iinfo(dtype).min, dtype=dtype)


def _tpu_vmem_capacity_bytes():
    """Best-effort physical VMEM size (used to derive block/vmem budgets)."""
    try:
        return int(pltpu.get_tpu_info().vmem_capacity_bytes)
    except Exception:
        pass
    try:
        kind = jax.devices()[0].device_kind.lower()
        if "v7" in kind:
            return 64 << 20
    except Exception:
        pass
    return 128 << 20


def _sublane_multiple(itemsize):
    # Packed dtypes tile sublanes in pairs/quads: bf16 -> 16, int8/fp8 -> 32.
    return {4: 8, 2: 16, 1: 32}.get(itemsize, 8)


def _spp_kernel(x_ref, out_ref, *, H, W, pool_sizes):
    """One grid step: a (Cblk, H*W) channel block, spatial flattened on lanes.

    x_ref:   (1, Cblk, H*W)
    out_ref: (1, n_pools + 1, Cblk, H*W)   slots ordered [p13, p9, p5, x]
    """
    HW = H * W
    dtype = x_ref.dtype
    neg = _pad_value(dtype)

    x = x_ref[0]                                        # (Cblk, HW)

    # Per-lane (flat spatial index) row / column indices, shared by all pools.
    li = lax.broadcasted_iota(jnp.int32, (1, HW), 1)
    if W & (W - 1) == 0:                                # power of two: bit ops
        w_idx = jnp.bitwise_and(li, W - 1)
        h_idx = jnp.right_shift(li, W.bit_length() - 1)
    else:
        # Exact for practical sizes (H*W << 2^24); +0.5 guards fp rounding.
        h_idx = jnp.floor((li.astype(jnp.float32) + 0.5) / jnp.float32(W))
        h_idx = h_idx.astype(jnp.int32)
        w_idx = li - h_idx * W

    # Cascade: pool_{r1+r2} == pool_{r1} o pool_{r2} for stride-1, -inf-padded
    # max pools.  Radii 2,4,6 -> per-stage shift distances are only 1..2.
    sorted_ks = sorted(pool_sizes)
    radii = [k // 2 for k in sorted_ks]
    deltas = [radii[0]] + [radii[i] - radii[i - 1] for i in range(1, len(radii))]
    max_d = max(deltas)

    # Hoisted boundary masks: computed once per block and closed over by the
    # shift helpers (JAX does not CSE these compares/broadcasts; previously
    # they were re-emitted three times each inside the cascade).
    w_ok = {}
    h_ok = {}
    for d in range(1, max_d + 1):
        w_ok[d], w_ok[-d] = (w_idx < W - d), (w_idx >= d)
        h_ok[d], h_ok[-d] = (h_idx < H - d), (h_idx >= d)

    def shift_w(v, d):
        # y[.., h*W + w] = v[.., h*W + w + d] if 0 <= w + d < W else pad
        return jnp.where(w_ok[d], pltpu.roll(v, (-d) % HW, axis=1), neg)

    def shift_h(v, d):
        # y[.., h*W + w] = v[.., (h+d)*W + w] if 0 <= h + d < H else pad
        return jnp.where(h_ok[d], pltpu.roll(v, (-d * W) % HW, axis=1), neg)

    def pool_r(v, r):
        # Separable (2r+1)x(2r+1) max pool, stride 1, "same" (-inf) padding.
        row = v
        for d in range(1, r + 1):
            row = jnp.maximum(row, shift_w(v, d))
            row = jnp.maximum(row, shift_w(v, -d))
        out = row
        for d in range(1, r + 1):
            out = jnp.maximum(out, shift_h(row, d))
            out = jnp.maximum(out, shift_h(row, -d))
        return out

    rev_sizes = tuple(reversed(pool_sizes))             # torch: maxpools[::-1]
    n_pools = len(pool_sizes)

    # Identity branch first (lets x die as early as possible).
    out_ref[0, n_pools, :, :] = x

    cur = x
    for k, delta in zip(sorted_ks, deltas):
        cur = pool_r(cur, delta)
        out_ref[0, rev_sizes.index(k), :, :] = cur


def spatial_pyramid_pooling(x, pool_sizes=POOL_SIZES, *,
                            max_block_bytes=None, min_grid_steps=8):
    """x: (B, C, H, W) -> (B, (len(pool_sizes)+1)*C, H, W), PyTorch ordering."""
    B, C, H, W = x.shape
    pool_sizes = tuple(int(k) for k in pool_sizes)
    assert all(k % 2 == 1 for k in pool_sizes), "pool sizes must be odd"
    n_out = len(pool_sizes) + 1
    HW = H * W
    itemsize = jnp.dtype(x.dtype).itemsize
    sublane = _sublane_multiple(itemsize)

    vmem_cap = _tpu_vmem_capacity_bytes()
    # Generation-aware input-block budget: 64 MiB-VMEM parts (v7x) get
    # ~512 KiB blocks (and need enough steps for 2 TensorCores); 128 MiB
    # parts (v5e/v6e) get ~1 MiB blocks to push DMA toward roofline.
    if max_block_bytes is None:
        max_block_bytes = (512 << 10) if vmem_cap <= (64 << 20) else (1 << 20)

    # --- channel-block (cblk) selection ---------------------------------
    # Block is (1, cblk, HW): cblk must divide C and be either a multiple of
    # the dtype's sublane packing (8/16/32) or the full C axis.
    aligned = [d for d in range(1, C + 1)
               if C % d == 0 and (d % sublane == 0 or d == C)]

    def in_bytes(d):
        return d * HW * itemsize

    def steps(d):
        return B * (C // d)

    fitting = [d for d in aligned if in_bytes(d) <= max_block_bytes]
    if fitting:
        # Largest block that still yields >= min_grid_steps total grid steps
        # (megacore split on v7x + pipeline depth); if none reaches that,
        # maximize the step count instead of ending at a 1-2 step grid.
        cblk = max(fitting, key=lambda d: (min(steps(d), min_grid_steps), d))
    else:
        # Nothing fits the soft budget (small C, large H*W): take the
        # smallest legal block and rely on the hard VMEM check below.
        cblk = min(aligned)

    # Derived VMEM requirement: double-buffered input + output blocks plus a
    # generous allowance for in-kernel temporaries (rolled copies, masks,
    # cascade intermediate), then a fixed slack.
    in_blk = in_bytes(cblk)
    out_blk = n_out * in_blk
    temps = 8 * cblk * HW * 4
    vmem_need = 2 * in_blk + 2 * out_blk + temps + (4 << 20)
    vmem_budget = (vmem_cap * 3) // 4
    if vmem_need > vmem_budget:
        # TODO(synk): add a spatial (H) tiling path with an r_max-row halo via
        # overlapping index_map for small-C / huge-H*W inputs.
        raise ValueError(
            f"SpatialPyramidPooling block ({cblk} ch x {HW} px x {itemsize}B "
            f"-> ~{vmem_need >> 20} MiB live VMEM) exceeds the "
            f"{vmem_budget >> 20} MiB VMEM budget on this TPU; the input "
            "needs spatial tiling.")
    vmem_limit = int(min(vmem_budget, max(vmem_need, 32 << 20)))

    x_flat = x.reshape(B, C, HW)                        # free: contiguous dims

    kernel = functools.partial(_spp_kernel, H=H, W=W, pool_sizes=pool_sizes)

    r_max = max(pool_sizes) // 2
    cost = pl.CostEstimate(
        flops=8 * r_max * B * C * H * W,                # maxima + selects
        transcendentals=0,
        bytes_accessed=(1 + n_out) * x.size * itemsize)

    out = pl.pallas_call(
        kernel,
        out_shape=jax.ShapeDtypeStruct((B, n_out, C, HW), x.dtype),
        grid_spec=pltpu.PrefetchScalarGridSpec(
            num_scalar_prefetch=0,
            grid=(B, C // cblk),
            in_specs=[
                pl.BlockSpec((1, cblk, HW), lambda b, c: (b, c, 0)),
            ],
            out_specs=pl.BlockSpec(
                (1, n_out, cblk, HW), lambda b, c: (b, 0, c, 0)),
        ),
        compiler_params=pltpu.CompilerParams(
            dimension_semantics=("parallel", "parallel"),
            vmem_limit_bytes=vmem_limit),
        cost_estimate=cost,
    )(x_flat)

    # (B, n_out, C, HW) -> (B, n_out*C, H, W): matches torch.cat(..., dim=1)
    # ordering [pool13 | pool9 | pool5 | x]; pure reshape, no data movement.
    return out.reshape(B, n_out * C, H, W)


def _reference_spp(x, pool_sizes=POOL_SIZES):
    """Pure-JAX reference (lax.reduce_window) mirroring the PyTorch module."""
    if jnp.issubdtype(x.dtype, jnp.floating):
        init = jnp.array(-jnp.inf, dtype=x.dtype)
    else:
        init = jnp.array(jnp.iinfo(x.dtype).min, dtype=x.dtype)
    feats = []
    for k in reversed(pool_sizes):
        p = k // 2
        pooled = lax.reduce_window(
            x, init, lax.max,
            window_dimensions=(1, 1, k, k),
            window_strides=(1, 1, 1, 1),
            padding=((0, 0), (0, 0), (p, p), (p, p)))
        feats.append(pooled)
    feats.append(x)
    return jnp.concatenate(feats, axis=1)


if __name__ == "__main__":
    key = jax.random.PRNGKey(0)

    # Small shape matching the module spec (single channel block).
    B, C, H, W = 2, 4, 16, 16
    x = jax.random.normal(key, (B, C, H, W), dtype=jnp.float32)
    out = jax.block_until_ready(spatial_pyramid_pooling(x))
    ref = _reference_spp(x)
    assert out.shape == (B, (len(POOL_SIZES) + 1) * C, H, W), out.shape
    assert jnp.allclose(out, ref, atol=1e-6, rtol=1e-6), "mismatch vs reference"

    # Second case exercising the multi-channel-block path (cblk < C) and a
    # spatial size that is not a multiple of 128.
    B2, C2, H2, W2 = 1, 32, 8, 8
    x2 = jax.random.normal(jax.random.PRNGKey(1), (B2, C2, H2, W2),
                           dtype=jnp.float32)
    out2 = jax.block_until_ready(spatial_pyramid_pooling(x2))
    ref2 = _reference_spp(x2)
    assert out2.shape == (B2, (len(POOL_SIZES) + 1) * C2, H2, W2), out2.shape
    assert jnp.allclose(out2, ref2, atol=1e-6, rtol=1e-6), "mismatch (blocked)"

    print("KERNEL_OK")
</pallas_src>

<mosaic_0001>
module attributes {stable_mosaic.version = 11 : i64} {
  func.func @_spp_kernel(%arg0: i32, %arg1: i32, %arg2: memref<1x4x256xf32, #tpu.memory_space<vmem>>, %arg3: memref<1x4x4x256xf32, #tpu.memory_space<vmem>>) attributes {dimension_semantics = [#tpu.dimension_semantics<parallel>, #tpu.dimension_semantics<parallel>], iteration_bounds = array<i64: 2, 1>, scalar_prefetch = 0 : i64, scratch_operands = 0 : i64, tpu.core_type = #tpu.core_type<tc>, window_params = [{transform_indices = @transform_0, window_bounds = array<i64: 1, 4, 256>}, {transform_indices = @transform_1, window_bounds = array<i64: 1, 4, 4, 256>}]} {
    %c0 = arith.constant 0 : index
    %c0_0 = arith.constant 0 : index
    %c0_1 = arith.constant 0 : index
    %0 = vector.load %arg2[%c0, %c0_0, %c0_1] : memref<1x4x256xf32, #tpu.memory_space<vmem>>, vector<1x4x256xf32>
    %1 = vector.shape_cast %0 : vector<1x4x256xf32> to vector<4x256xf32>
    %2 = tpu.iota {dimensions = array<i32: 1>} : vector<1x256xi32>
    %c15_i32 = arith.constant 15 : i32
    %3 = vector.broadcast %c15_i32 : i32 to vector<1x256xi32>
    %4 = arith.andi %2, %3 : vector<1x256xi32>
    %c4_i32 = arith.constant 4 : i32
    %5 = vector.broadcast %c4_i32 : i32 to vector<1x256xi32>
    %6 = arith.shrsi %2, %5 : vector<1x256xi32>
    %c15_i32_2 = arith.constant 15 : i32
    %7 = vector.broadcast %c15_i32_2 : i32 to vector<1x256xi32>
    %8 = arith.cmpi slt, %4, %7 : vector<1x256xi32>
    %c1_i32 = arith.constant 1 : i32
    %9 = vector.broadcast %c1_i32 : i32 to vector<1x256xi32>
    %10 = arith.cmpi sge, %4, %9 : vector<1x256xi32>
    %c15_i32_3 = arith.constant 15 : i32
    %11 = vector.broadcast %c15_i32_3 : i32 to vector<1x256xi32>
    %12 = arith.cmpi slt, %6, %11 : vector<1x256xi32>
    %c1_i32_4 = arith.constant 1 : i32
    %13 = vector.broadcast %c1_i32_4 : i32 to vector<1x256xi32>
    %14 = arith.cmpi sge, %6, %13 : vector<1x256xi32>
    %c14_i32 = arith.constant 14 : i32
    %15 = vector.broadcast %c14_i32 : i32 to vector<1x256xi32>
    %16 = arith.cmpi slt, %4, %15 : vector<1x256xi32>
    %c2_i32 = arith.constant 2 : i32
    %17 = vector.broadcast %c2_i32 : i32 to vector<1x256xi32>
    %18 = arith.cmpi sge, %4, %17 : vector<1x256xi32>
    %c14_i32_5 = arith.constant 14 : i32
    %19 = vector.broadcast %c14_i32_5 : i32 to vector<1x256xi32>
    %20 = arith.cmpi slt, %6, %19 : vector<1x256xi32>
    %c2_i32_6 = arith.constant 2 : i32
    %21 = vector.broadcast %c2_i32_6 : i32 to vector<1x256xi32>
    %22 = arith.cmpi sge, %6, %21 : vector<1x256xi32>
    %c0_7 = arith.constant 0 : index
    %c3 = arith.constant 3 : index
    %c0_8 = arith.constant 0 : index
    %c0_9 = arith.constant 0 : index
    %23 = vector.load %arg3[%c0_7, %c3, %c0_8, %c0_9] : memref<1x4x4x256xf32, #tpu.memory_space<vmem>>, vector<1x1x4x256xf32>
    %24 = vector.shape_cast %23 : vector<1x1x4x256xf32> to vector<4x256xf32>
    %25 = vector.shape_cast %1 : vector<4x256xf32> to vector<1x1x4x256xf32>
    tpu.vector_store %arg3[%c0_7, %c3, %c0_8, %c0_9], %25 {strides = array<i32>} : memref<1x4x4x256xf32, #tpu.memory_space<vmem>>, vector<1x1x4x256xf32>,
    %c255_i32 = arith.constant 255 : i32
    %26 = tpu.dynamic_rotate %1 by %c255_i32 dim 1 : vector<4x256xf32>, i32 -> vector<4x256xf32>
    %cst = arith.constant 0xFF800000 : f32
    %27 = vector.shape_cast %8 : vector<1x256xi1> to vector<1x256xi1>
    %28 = vector.broadcast %27 : vector<1x256xi1> to vector<4x256xi1>
    %29 = vector.broadcast %cst : f32 to vector<4x256xf32>
    %30 = arith.select %28, %26, %29 : vector<4x256xi1>, vector<4x256xf32>
    %31 = arith.maximumf %1, %30 : vector<4x256xf32>
    %c1_i32_10 = arith.constant 1 : i32
    %32 = tpu.dynamic_rotate %1 by %c1_i32_10 dim 1 : vector<4x256xf32>, i32 -> vector<4x256xf32>
    %cst_11 = arith.constant 0xFF800000 : f32
    %33 = vector.shape_cast %10 : vector<1x256xi1> to vector<1x256xi1>
    %34 = vector.broadcast %33 : vector<1x256xi1> to vector<4x256xi1>
    %35 = vector.broadcast %cst_11 : f32 to vector<4x256xf32>
    %36 = arith.select %34, %32, %35 : vector<4x256xi1>, vector<4x256xf32>
    %37 = arith.maximumf %31, %36 : vector<4x256xf32>
    %c254_i32 = arith.constant 254 : i32
    %38 = tpu.dynamic_rotate %1 by %c254_i32 dim 1 : vector<4x256xf32>, i32 -> vector<4x256xf32>
    %cst_12 = arith.constant 0xFF800000 : f32
    %39 = vector.shape_cast %16 : vector<1x256xi1> to vector<1x256xi1>
    %40 = vector.broadcast %39 : vector<1x256xi1> to vector<4x256xi1>
    %41 = vector.broadcast %cst_12 : f32 to vector<4x256xf32>
    %42 = arith.select %40, %38, %41 : vector<4x256xi1>, vector<4x256xf32>
    %43 = arith.maximumf %37, %42 : vector<4x256xf32>
    %c2_i32_13 = arith.constant 2 : i32
    %44 = tpu.dynamic_rotate %1 by %c2_i32_13 dim 1 : vector<4x256xf32>, i32 -> vector<4x256xf32>
    %cst_14 = arith.constant 0xFF800000 : f32
    %45 = vector.shape_cast %18 : vector<1x256xi1> to vector<1x256xi1>
    %46 = vector.broadcast %45 : vector<1x256xi1> to vector<4x256xi1>
    %47 = vector.broadcast %cst_14 : f32 to vector<4x256xf32>
    %48 = arith.select %46, %44, %47 : vector<4x256xi1>, vector<4x256xf32>
    %49 = arith.maximumf %43, %48 : vector<4x256xf32>
    %c240_i32 = arith.constant 240 : i32
    %50 = tpu.dynamic_rotate %49 by %c240_i32 dim 1 : vector<4x256xf32>, i32 -> vector<4x256xf32>
    %cst_15 = arith.constant 0xFF800000 : f32
    %51 = vector.shape_cast %12 : vector<1x256xi1> to vector<1x256xi1>
    %52 = vector.broadcast %51 : vector<1x256xi1> to vector<4x256xi1>
    %53 = vector.broadcast %cst_15 : f32 to vector<4x256xf32>
    %54 = arith.select %52, %50, %53 : vector<4x256xi1>, vector<4x256xf32>
    %55 = arith.maximumf %49, %54 : vector<4x256xf32>
    %c16_i32 = arith.constant 16 : i32
    %56 = tpu.dynamic_rotate %49 by %c16_i32 dim 1 : vector<4x256xf32>, i32 -> vector<4x256xf32>
    %cst_16 = arith.constant 0xFF800000 : f32
    %57 = vector.shape_cast %14 : vector<1x256xi1> to vector<1x256xi1>
    %58 = vector.broadcast %57 : vector<1x256xi1> to vector<4x256xi1>
    %59 = vector.broadcast %cst_16 : f32 to vector<4x256xf32>
    %60 = arith.select %58, %56, %59 : vector<4x256xi1>, vector<4x256xf32>
    %61 = arith.maximumf %55, %60 : vector<4x256xf32>
    %c224_i32 = arith.constant 224 : i32
    %62 = tpu.dynamic_rotate %49 by %c224_i32 dim 1 : vector<4x256xf32>, i32 -> vector<4x256xf32>
    %cst_17 = arith.constant 0xFF800000 : f32
    %63 = vector.shape_cast %20 : vector<1x256xi1> to vector<1x256xi1>
    %64 = vector.broadcast %63 : vector<1x256xi1> to vector<4x256xi1>
    %65 = vector.broadcast %cst_17 : f32 to vector<4x256xf32>
    %66 = arith.select %64, %62, %65 : vector<4x256xi1>, vector<4x256xf32>
    %67 = arith.maximumf %61, %66 : vector<4x256xf32>
    %c32_i32 = arith.constant 32 : i32
    %68 = tpu.dynamic_rotate %49 by %c32_i32 dim 1 : vector<4x256xf32>, i32 -> vector<4x256xf32>
    %cst_18 = arith.constant 0xFF800000 : f32
    %69 = vector.shape_cast %22 : vector<1x256xi1> to vector<1x256xi1>
    %70 = vector.broadcast %69 : vector<1x256xi1> to vector<4x256xi1>
    %71 = vector.broadcast %cst_18 : f32 to vector<4x256xf32>
    %72 = arith.select %70, %68, %71 : vector<4x256xi1>, vector<4x256xf32>
    %73 = arith.maximumf %67, %72 : vector<4x256xf32>
    %c0_19 = arith.constant 0 : index
    %c2 = arith.constant 2 : index
    %c0_20 = arith.constant 0 : index
    %c0_21 = arith.constant 0 : index
    %74 = vector.load %arg3[%c0_19, %c2, %c0_20, %c0_21] : memref<1x4x4x256xf32, #tpu.memory_space<vmem>>, vector<1x1x4x256xf32>
    %75 = vector.shape_cast %74 : vector<1x1x4x256xf32> to vector<4x256xf32>
    %76 = vector.shape_cast %73 : vector<4x256xf32> to vector<1x1x4x256xf32>
    tpu.vector_store %arg3[%c0_19, %c2, %c0_20, %c0_21], %76 {strides = array<i32>} : memref<1x4x4x256xf32, #tpu.memory_space<vmem>>, vector<1x1x4x256xf32>,
    %c255_i32_22 = arith.constant 255 : i32
    %77 = tpu.dynamic_rotate %73 by %c255_i32_22 dim 1 : vector<4x256xf32>, i32 -> vector<4x256xf32>
    %cst_23 = arith.constant 0xFF800000 : f32
    %78 = vector.shape_cast %8 : vector<1x256xi1> to vector<1x256xi1>
    %79 = vector.broadcast %78 : vector<1x256xi1> to vector<4x256xi1>
    %80 = vector.broadcast %cst_23 : f32 to vector<4x256xf32>
    %81 = arith.select %79, %77, %80 : vector<4x256xi1>, vector<4x256xf32>
    %82 = arith.maximumf %73, %81 : vector<4x256xf32>
    %c1_i32_24 = arith.constant 1 : i32
    %83 = tpu.dynamic_rotate %73 by %c1_i32_24 dim 1 : vector<4x256xf32>, i32 -> vector<4x256xf32>
    %cst_25 = arith.constant 0xFF800000 : f32
    %84 = vector.shape_cast %10 : vector<1x256xi1> to vector<1x256xi1>
    %85 = vector.broadcast %84 : vector<1x256xi1> to vector<4x256xi1>
    %86 = vector.broadcast %cst_25 : f32 to vector<4x256xf32>
    %87 = arith.select %85, %83, %86 : vector<4x256xi1>, vector<4x256xf32>
    %88 = arith.maximumf %82, %87 : vector<4x256xf32>
    %c254_i32_26 = arith.constant 254 : i32
    %89 = tpu.dynamic_rotate %73 by %c254_i32_26 dim 1 : vector<4x256xf32>, i32 -> vector<4x256xf32>
    %cst_27 = arith.constant 0xFF800000 : f32
    %90 = vector.shape_cast %16 : vector<1x256xi1> to vector<1x256xi1>
    %91 = vector.broadcast %90 : vector<1x256xi1> to vector<4x256xi1>
    %92 = vector.broadcast %cst_27 : f32 to vector<4x256xf32>
    %93 = arith.select %91, %89, %92 : vector<4x256xi1>, vector<4x256xf32>
    %94 = arith.maximumf %88, %93 : vector<4x256xf32>
    %c2_i32_28 = arith.constant 2 : i32
    %95 = tpu.dynamic_rotate %73 by %c2_i32_28 dim 1 : vector<4x256xf32>, i32 -> vector<4x256xf32>
    %cst_29 = arith.constant 0xFF800000 : f32
    %96 = vector.shape_cast %18 : vector<1x256xi1> to vector<1x256xi1>
    %97 = vector.broadcast %96 : vector<1x256xi1> to vector<4x256xi1>
    %98 = vector.broadcast %cst_29 : f32 to vector<4x256xf32>
    %99 = arith.select %97, %95, %98 : vector<4x256xi1>, vector<4x256xf32>
    %100 = arith.maximumf %94, %99 : vector<4x256xf32>
    %c240_i32_30 = arith.constant 240 : i32
    %101 = tpu.dynamic_rotate %100 by %c240_i32_30 dim 1 : vector<4x256xf32>, i32 -> vector<4x256xf32>
    %cst_31 = arith.constant 0xFF800000 : f32
    %102 = vector.shape_cast %12 : vector<1x256xi1> to vector<1x256xi1>
    %103 = vector.broadcast %102 : vector<1x256xi1> to vector<4x256xi1>
    %104 = vector.broadcast %cst_31 : f32 to vector<4x256xf32>
    %105 = arith.select %103, %101, %104 : vector<4x256xi1>, vector<4x256xf32>
    %106 = arith.maximumf %100, %105 : vector<4x256xf32>
    %c16_i32_32 = arith.constant 16 : i32
    %107 = tpu.dynamic_rotate %100 by %c16_i32_32 dim 1 : vector<4x256xf32>, i32 -> vector<4x256xf32>
    %cst_33 = arith.constant 0xFF800000 : f32
    %108 = vector.shape_cast %14 : vector<1x256xi1> to vector<1x256xi1>
    %109 = vector.broadcast %108 : vector<1x256xi1> to vector<4x256xi1>
    %110 = vector.broadcast %cst_33 : f32 to vector<4x256xf32>
    %111 = arith.select %109, %107, %110 : vector<4x256xi1>, vector<4x256xf32>
    %112 = arith.maximumf %106, %111 : vector<4x256xf32>
    %c224_i32_34 = arith.constant 224 : i32
    %113 = tpu.dynamic_rotate %100 by %c224_i32_34 dim 1 : vector<4x256xf32>, i32 -> vector<4x256xf32>
    %cst_35 = arith.constant 0xFF800000 : f32
    %114 = vector.shape_cast %20 : vector<1x256xi1> to vector<1x256xi1>
    %115 = vector.broadcast %114 : vector<1x256xi1> to vector<4x256xi1>
    %116 = vector.broadcast %cst_35 : f32 to vector<4x256xf32>
    %117 = arith.select %115, %113, %116 : vector<4x256xi1>, vector<4x256xf32>
    %118 = arith.maximumf %112, %117 : vector<4x256xf32>
    %c32_i32_36 = arith.constant 32 : i32
    %119 = tpu.dynamic_rotate %100 by %c32_i32_36 dim 1 : vector<4x256xf32>, i32 -> vector<4x256xf32>
    %cst_37 = arith.constant 0xFF800000 : f32
    %120 = vector.shape_cast %22 : vector<1x256xi1> to vector<1x256xi1>
    %121 = vector.broadcast %120 : vector<1x256xi1> to vector<4x256xi1>
    %122 = vector.broadcast %cst_37 : f32 to vector<4x256xf32>
    %123 = arith.select %121, %119, %122 : vector<4x256xi1>, vector<4x256xf32>
    %124 = arith.maximumf %118, %123 : vector<4x256xf32>
    %c0_38 = arith.constant 0 : index
    %c1 = arith.constant 1 : index
    %c0_39 = arith.constant 0 : index
    %c0_40 = arith.constant 0 : index
    %125 = vector.load %arg3[%c0_38, %c1, %c0_39, %c0_40] : memref<1x4x4x256xf32, #tpu.memory_space<vmem>>, vector<1x1x4x256xf32>
    %126 = vector.shape_cast %125 : vector<1x1x4x256xf32> to vector<4x256xf32>
    %127 = vector.shape_cast %124 : vector<4x256xf32> to vector<1x1x4x256xf32>
    tpu.vector_store %arg3[%c0_38, %c1, %c0_39, %c0_40], %127 {strides = array<i32>} : memref<1x4x4x256xf32, #tpu.memory_space<vmem>>, vector<1x1x4x256xf32>,
    %c255_i32_41 = arith.constant 255 : i32
    %128 = tpu.dynamic_rotate %124 by %c255_i32_41 dim 1 : vector<4x256xf32>, i32 -> vector<4x256xf32>
    %cst_42 = arith.constant 0xFF800000 : f32
    %129 = vector.shape_cast %8 : vector<1x256xi1> to vector<1x256xi1>
    %130 = vector.broadcast %129 : vector<1x256xi1> to vector<4x256xi1>
    %131 = vector.broadcast %cst_42 : f32 to vector<4x256xf32>
    %132 = arith.select %130, %128, %131 : vector<4x256xi1>, vector<4x256xf32>
    %133 = arith.maximumf %124, %132 : vector<4x256xf32>
    %c1_i32_43 = arith.constant 1 : i32
    %134 = tpu.dynamic_rotate %124 by %c1_i32_43 dim 1 : vector<4x256xf32>, i32 -> vector<4x256xf32>
    %cst_44 = arith.constant 0xFF800000 : f32
    %135 = vector.shape_cast %10 : vector<1x256xi1> to vector<1x256xi1>
    %136 = vector.broadcast %135 : vector<1x256xi1> to vector<4x256xi1>
    %137 = vector.broadcast %cst_44 : f32 to vector<4x256xf32>
    %138 = arith.select %136, %134, %137 : vector<4x256xi1>, vector<4x256xf32>
    %139 = arith.maximumf %133, %138 : vector<4x256xf32>
    %c254_i32_45 = arith.constant 254 : i32
    %140 = tpu.dynamic_rotate %124 by %c254_i32_45 dim 1 : vector<4x256xf32>, i32 -> vector<4x256xf32>
    %cst_46 = arith.constant 0xFF800000 : f32
    %141 = vector.shape_cast %16 : vector<1x256xi1> to vector<1x256xi1>
    %142 = vector.broadcast %141 : vector<1x256xi1> to vector<4x256xi1>
    %143 = vector.broadcast %cst_46 : f32 to vector<4x256xf32>
    %144 = arith.select %142, %140, %143 : vector<4x256xi1>, vector<4x256xf32>
    %145 = arith.maximumf %139, %144 : vector<4x256xf32>
    %c2_i32_47 = arith.constant 2 : i32
    %146 = tpu.dynamic_rotate %124 by %c2_i32_47 dim 1 : vector<4x256xf32>, i32 -> vector<4x256xf32>
    %cst_48 = arith.constant 0xFF800000 : f32
    %147 = vector.shape_cast %18 : vector<1x256xi1> to vector<1x256xi1>
    %148 = vector.broadcast %147 : vector<1x256xi1> to vector<4x256xi1>
    %149 = vector.broadcast %cst_48 : f32 to vector<4x256xf32>
    %150 = arith.select %148, %146, %149 : vector<4x256xi1>, vector<4x256xf32>
    %151 = arith.maximumf %145, %150 : vector<4x256xf32>
    %c240_i32_49 = arith.constant 240 : i32
    %152 = tpu.dynamic_rotate %151 by %c240_i32_49 dim 1 : vector<4x256xf32>, i32 -> vector<4x256xf32>
    %cst_50 = arith.constant 0xFF800000 : f32
    %153 = vector.shape_cast %12 : vector<1x256xi1> to vector<1x256xi1>
    %154 = vector.broadcast %153 : vector<1x256xi1> to vector<4x256xi1>
    %155 = vector.broadcast %cst_50 : f32 to vector<4x256xf32>
    %156 = arith.select %154, %152, %155 : vector<4x256xi1>, vector<4x256xf32>
    %157 = arith.maximumf %151, %156 : vector<4x256xf32>
    %c16_i32_51 = arith.constant 16 : i32
    %158 = tpu.dynamic_rotate %151 by %c16_i32_51 dim 1 : vector<4x256xf32>, i32 -> vector<4x256xf32>
    %cst_52 = arith.constant 0xFF800000 : f32
    %159 = vector.shape_cast %14 : vector<1x256xi1> to vector<1x256xi1>
    %160 = vector.broadcast %159 : vector<1x256xi1> to vector<4x256xi1>
    %161 = vector.broadcast %cst_52 : f32 to vector<4x256xf32>
    %162 = arith.select %160, %158, %161 : vector<4x256xi1>, vector<4x256xf32>
    %163 = arith.maximumf %157, %162 : vector<4x256xf32>
    %c224_i32_53 = arith.constant 224 : i32
    %164 = tpu.dynamic_rotate %151 by %c224_i32_53 dim 1 : vector<4x256xf32>, i32 -> vector<4x256xf32>
    %cst_54 = arith.constant 0xFF800000 : f32
    %165 = vector.shape_cast %20 : vector<1x256xi1> to vector<1x256xi1>
    %166 = vector.broadcast %165 : vector<1x256xi1> to vector<4x256xi1>
    %167 = vector.broadcast %cst_54 : f32 to vector<4x256xf32>
    %168 = arith.select %166, %164, %167 : vector<4x256xi1>, vector<4x256xf32>
    %169 = arith.maximumf %163, %168 : vector<4x256xf32>
    %c32_i32_55 = arith.constant 32 : i32
    %170 = tpu.dynamic_rotate %151 by %c32_i32_55 dim 1 : vector<4x256xf32>, i32 -> vector<4x256xf32>
    %cst_56 = arith.constant 0xFF800000 : f32
    %171 = vector.shape_cast %22 : vector<1x256xi1> to vector<1x256xi1>
    %172 = vector.broadcast %171 : vector<1x256xi1> to vector<4x256xi1>
    %173 = vector.broadcast %cst_56 : f32 to vector<4x256xf32>
    %174 = arith.select %172, %170, %173 : vector<4x256xi1>, vector<4x256xf32>
    %175 = arith.maximumf %169, %174 : vector<4x256xf32>
    %c0_57 = arith.constant 0 : index
    %c0_58 = arith.constant 0 : index
    %c0_59 = arith.constant 0 : index
    %c0_60 = arith.constant 0 : index
    %176 = vector.load %arg3[%c0_57, %c0_58, %c0_59, %c0_60] : memref<1x4x4x256xf32, #tpu.memory_space<vmem>>, vector<1x1x4x256xf32>
    %177 = vector.shape_cast %176 : vector<1x1x4x256xf32> to vector<4x256xf32>
    %178 = vector.shape_cast %175 : vector<4x256xf32> to vector<1x1x4x256xf32>
    tpu.vector_store %arg3[%c0_57, %c0_58, %c0_59, %c0_60], %178 {strides = array<i32>} : memref<1x4x4x256xf32, #tpu.memory_space<vmem>>, vector<1x1x4x256xf32>,
    return
  }
  func.func @transform_0(%arg0: i32, %arg1: i32) -> (i32, i32, i32) {
    %c0_i32 = arith.constant 0 : i32
    %c0_i32_0 = arith.constant 0 : i32
    return %arg0, %arg1, %c0_i32 : i32, i32, i32
  }
  func.func @transform_1(%arg0: i32, %arg1: i32) -> (i32, i32, i32, i32) {
    %c0_i32 = arith.constant 0 : i32
    %c0_i32_0 = arith.constant 0 : i32
    %c0_i32_1 = arith.constant 0 : i32
    return %arg0, %c0_i32, %arg1, %c0_i32_0 : i32, i32, i32, i32
  }
}

</mosaic_0001>

<llo_original>
// kernel: tpu_custom_call.1
$region0: #{tpu_custom_call.1}
  #allocation0 [shape = 'u32[]', space=smem, size = 0x4, offset = 0x4, fixed_abs, tag = 'smem constant byte address 0x4 - core index']
  #allocation1 [shape = 'u32[144,128]{1,0:T(1,128)}', space=vmem, size = 0x12000, scoped, tag = 'internal scratch']
  %s0 = inlined_call_operand.hbm [shape: f32[2,4,256], index: 0, kind: input, shape index: {}]
  %s1 = inlined_call_operand.hbm [shape: f32[2,4,4,256], index: 1, kind: output, shape index: {}]
  %s2 = sld [smem:[#allocation0]]
  $region41: #{tpu_custom_call.1} parent=0
    _
  %s4 = ssub.s32 1, %s2
  %s5 = scalar_select 0, %s4, %s2
  $region1: #{tpu_custom_call.1} parent=0
    #allocation2 [shape = 'u8[8192]{0}', space=vmem, size = 0x2000, scoped, tag = 'input window, operand 0']
    #allocation3 [shape = 's32[2]{0}', space=sflag, size = 0x8, scoped, tag = 'scoped memory for tpu_custom_call.1']
    #allocation4 [shape = 's32[2]{0}', space=sflag, size = 0x8, scoped, tag = 'scoped memory for tpu_custom_call.1']
    #allocation5 [shape = 'u8[32768]{0}', space=vmem, size = 0x8000, scoped, tag = 'output window, operand 0']
    %6 = vsyncpa [#allocation3], 0
    %s7 = scalar_lea.sflag [#allocation3], 1
    %8 = vsyncpa %s7, 0
    %9 = vsyncpa [#allocation4], 0
    %s10 = scalar_lea.sflag [#allocation4], 1
    %11 = vsyncpa %s10, 0
    loop: start=0, step=1, limit=4
    $region2: #{tpu_custom_call.1} parent=1 // loop_pre_header
      _
    $region3: #{tpu_custom_call.1} parent=1 // loop_header
      %s13 = sphi 0, %s17
      %p14 = scmp.ge.s32.totalorder %s13, 4
      %s20 = sphi 0, %s32
      %s21 = sphi 0, %s28
      %s22 = sphi 0, %s20
      %s23 = sphi 0, %s21
      %s24 = sphi 0, %s22
      %s25 = sphi 0, %s23
      %s37 = sphi 0, %s39
      %s40 = sphi 0, %s37
      %s41 = sphi 0, %s40
      %s57 = sphi 0, %s41
      %s65 = sphi 0, %s67
      %s68 = sphi 0, %s65
      %s69 = sphi 0, %s68
      %s85 = sphi 0, %s69
    $region4: #{tpu_custom_call.1} parent=1 // loop_header_branch
      %16 = sbr.rel (%p14) target = $region8
    $region5: #{tpu_custom_call.1} parent=1 // loop_body
      %s18 = ssub.s32 %s13, 1
      %s19 = ssub.s32 %s13, 2
      %s26 = sadd.s32 1, %s21
      %p27 = scmp.ge.s32.totalorder %s26, 1
      %s28 = scalar_select %p27, 0, %s26
      %s29 = sadd.s32 1, %s20
      %s30 = scalar_select %p27, %s29, %s20
      %p31 = scmp.ge.s32.totalorder %s30, 2
      %s32 = scalar_select %p31, 0, %s30
      %s33 = ssub.s32 %s20, %s32
      %s34 = ssub.s32 %s21, %s28
      %s35 = sor.u32 %s33, %s34
      %p36 = scmp.eq.s32.totalorder %s35, 0
      %s38 = sadd.s32 %s37, 1
      %s39 = scalar_select %p36, %s37, %s38
      %p42 = pneg %p36
      %p43 = scmp.eq.s32.totalorder %s13, 1
      %p44 = por %p42, %p43
      %p45 = scmp.ne.s32.totalorder %s37, %s40
      %p46 = scmp.eq.s32.totalorder %s13, 0
      %p47 = por %p45, %p46
      %p48 = scmp.ne.s32.totalorder %s37, %s40
      %p49 = scmp.eq.s32.totalorder %s18, 1
      %p50 = por %p48, %p49
      %p51 = scmp.ne.s32.totalorder %s40, %s41
      %p52 = scmp.eq.s32.totalorder %s18, 0
      %p53 = por %p51, %p52
      %p54 = scmp.ne.s32.totalorder %s40, %s41
      %p55 = scmp.eq.s32.totalorder %s19, 1
      %p56 = por %p54, %p55
      %p58 = scmp.ne.s32.totalorder %s41, %s57
      %p59 = scmp.eq.s32.totalorder %s19, 0
      %p60 = por %p58, %p59
      %s61 = ssub.s32 %s20, %s32
      %s62 = ssub.s32 %s21, %s28
      %s63 = sor.u32 %s61, %s62
      %p64 = scmp.eq.s32.totalorder %s63, 0
      %s66 = sadd.s32 %s65, 1
      %s67 = scalar_select %p64, %s65, %s66
      %p70 = pneg %p64
      %p71 = scmp.eq.s32.totalorder %s13, 1
      %p72 = por %p70, %p71
      %p73 = scmp.ne.s32.totalorder %s65, %s68
      %p74 = scmp.eq.s32.totalorder %s13, 0
      %p75 = por %p73, %p74
      %p76 = scmp.ne.s32.totalorder %s65, %s68
      %p77 = scmp.eq.s32.totalorder %s18, 1
      %p78 = por %p76, %p77
      %p79 = scmp.ne.s32.totalorder %s68, %s69
      %p80 = scmp.eq.s32.totalorder %s18, 0
      %p81 = por %p79, %p80
      %p82 = scmp.ne.s32.totalorder %s68, %s69
      %p83 = scmp.eq.s32.totalorder %s19, 1
      %p84 = por %p82, %p83
      %p86 = scmp.ne.s32.totalorder %s69, %s85
      %p87 = scmp.eq.s32.totalorder %s19, 0
      %p88 = por %p86, %p87
      %p89 = scmp.le.s32.totalorder 1, %s13
      %p90 = scmp.lt.s32.totalorder %s13, 3
      %p91 = pnand %p89, %p90
      %p92 = pneg %p91
      // Predicated region
      $region9: #{tpu_custom_call.1} parent=5 // pred_check
        _
      $region10: #{tpu_custom_call.1} parent=5 // pred_check_branch
        %94 = sbr.rel (%p91) target = $region12
      $region11: #{tpu_custom_call.1} parent=5 // pred_region
        %s95 = ssub.s32 %s13, 1
      $region12: #{tpu_custom_call.1} parent=5 // pred_fallthru
        _
      %p96 = scmp.lt.s32.totalorder %s13, 2
      // Predicated region
      $region13: #{tpu_custom_call.1} parent=5 // pred_check
        %p97 = pneg %p96
      $region14: #{tpu_custom_call.1} parent=5 // pred_check_branch
        %99 = sbr.rel (%p97) target = $region16
      $region15: #{tpu_custom_call.1} parent=5 // pred_region
        // Predicated region
        $region17: #{tpu_custom_call.1} parent=15 // pred_check
          %p100 = pneg %p47
        $region18: #{tpu_custom_call.1} parent=15 // pred_check_branch
          %102 = sbr.rel (%p100) target = $region20
        $region19: #{tpu_custom_call.1} parent=15 // pred_region
          %s103 = sand.u32 %s37, 1
          %s104 = scalar_lea.sflag [#allocation3], %s103
          %s105 = sand.u32 %s37, 1
          %s106 = smul.addr %s105, 8
          %s107 = scalar_lea.vmem [#allocation2], %s106
          %s109 = ssub.s32 128, 128
          %110 = vsyncadd %s104, %s109
          %s111 = smul.addr %s21, 2
          %s112 = smul.addr %s20, 2
          %s113 = sadd.s32 %s111, %s112
          %s114 = smul.addr %s113, 64
          %s115 = scalar_lea.hbm %s0, %s114
          %s117 = sshll.u32 %s107, 4
          %s118 = int_to_ptr.vmem [resolvable:$true] %s117
          %120 = dma.hbm_to_vmem [thread:$0]  %s115, 128, %s118, %s104
        $region20: #{tpu_custom_call.1} parent=15 // pred_fallthru
          _
      $region16: #{tpu_custom_call.1} parent=5 // pred_fallthru
        _
      %p121 = scmp.le.s32.totalorder 1, %s13
      %p122 = scmp.lt.s32.totalorder %s13, 3
      %p123 = pnand %p121, %p122
      %p124 = pneg %p123
      // Predicated region
      $region21: #{tpu_custom_call.1} parent=5 // pred_check
        _
      $region22: #{tpu_custom_call.1} parent=5 // pred_check_branch
        %126 = sbr.rel (%p123) target = $region24
      $region23: #{tpu_custom_call.1} parent=5 // pred_region
        %s127 = ssub.s32 %s13, 1
        %s128 = sand.u32 %s40, 1
        %s129 = scalar_lea.sflag [#allocation3], %s128
        %s130 = sand.u32 %s40, 1
        %s131 = smul.addr %s130, 8
        %s132 = scalar_lea.vmem [#allocation2], %s131
        // Predicated region
        $region25: #{tpu_custom_call.1} parent=23 // pred_check
          %p133 = pneg %p53
        $region26: #{tpu_custom_call.1} parent=23 // pred_check_branch
          %135 = sbr.rel (%p133) target = $region28
        $region27: #{tpu_custom_call.1} parent=23 // pred_region
          %136 = dma.done %s129, 128
        $region28: #{tpu_custom_call.1} parent=23 // pred_fallthru
          _
        %s137 = sand.u32 %s40, 1
        %s138 = scalar_lea.sflag [#allocation3], %s137
        %s139 = sand.u32 %s40, 1
        %s140 = smul.addr %s139, 8
        %s141 = scalar_lea.vmem [#allocation2], %s140
        %p142 = pneg %p53
        %p143 = pneg %p50
        %p144 = pneg %p81
        %p145 = pneg %p78
        %s146 = sand.u32 %s68, 1
        %s147 = scalar_lea.sflag [#allocation4], %s146
        %s148 = sand.u32 %s68, 1
        %s149 = smul.addr %s148, 32
        %s150 = scalar_lea.vmem [#allocation5], %s149
        %v151 = vld [vmem:[%s132] sm:$0xff]
        %v152 = vlaneseq
        %v153 = vand.u32 %v152, 127
        %v154 = vadd.s32 %v153, 128
        %v155 = vand.u32 %v153, 15
        %v156 = vand.u32 %v154, 15
        %v157 = vshra.s32 %v153, 4
        %v158 = vshra.s32 %v154, 4
        %vm159 = vcmp.lt.s32.totalorder %v155, 15
        %vm160 = vcmp.lt.s32.totalorder %v156, 15
        %vm161 = vcmp.ge.s32.totalorder %v155, 1
        %vm162 = vcmp.ge.s32.totalorder %v156, 1
        %vm163 = vcmp.lt.s32.totalorder %v157, 15
        %vm164 = vcmp.lt.s32.totalorder %v158, 15
        %vm165 = vcmp.ge.s32.totalorder %v157, 1
        %vm166 = vcmp.ge.s32.totalorder %v158, 1
        %vm167 = vcmp.lt.s32.totalorder %v155, 14
        %vm168 = vcmp.lt.s32.totalorder %v156, 14
        %vm169 = vcmp.ge.s32.totalorder %v155, 2
        %vm170 = vcmp.ge.s32.totalorder %v156, 2
        %vm171 = vcmp.lt.s32.totalorder %v157, 14
        %vm172 = vcmp.lt.s32.totalorder %v158, 14
        %vm173 = vcmp.ge.s32.totalorder %v157, 2
        %vm174 = vcmp.ge.s32.totalorder %v158, 2
        %s175 = scalar_lea.vmem %s150, 24 [#allocation5]
        %176 = vst [vmem:[%s175] sm:$0xff] %v151
        %v178 = vcombine.high %v151, %v151
        %180 = vrot.lane.b32.xlu0 %v151, 127
        %v181 = vpop.permute.xlu0 %180
        %182 = vrot.lane.b32.xlu0 %v178, 127
        %v183 = vpop.permute.xlu0 %182
        %vm184 = vcmp.lt.s32.totalorder %v153, 127
        %v185 = vsel %vm184, %v181, %v183
        %v186 = vsel %vm184, %v183, %v181
        %v187 = vsel %vm159, 1, 0
        %v188 = vsel %vm160, 1, 0
        %vm189 = vcmp.eq.s32.totalorder %v187, 1
        %vm190 = vcmp.eq.s32.totalorder %v188, 1
        %v191 = vsel %vm189, %v185, -inf
        %v192 = vsel %vm190, %v186, -inf
        %v195 = vcombine.low %v191, %v192
        %v197 = vmax.f32 %v151, %v195
        %198 = vrot.lane.b32.xlu0 %v151, 1
        %v199 = vpop.permute.xlu0 %198
        %200 = vrot.lane.b32.xlu0 %v178, 1
        %v201 = vpop.permute.xlu0 %200
        %vm202 = vcmp.lt.s32.totalorder %v153, 1
        %v203 = vsel %vm202, %v199, %v201
        %v204 = vsel %vm202, %v201, %v199
        %v205 = vsel %vm161, 1, 0
        %v206 = vsel %vm162, 1, 0
        %vm207 = vcmp.eq.s32.totalorder %v205, 1
        %vm208 = vcmp.eq.s32.totalorder %v206, 1
        %v209 = vsel %vm207, %v204, -inf
        %v210 = vsel %vm208, %v203, -inf
        %v213 = vcombine.low %v209, %v210
        %v215 = vmax.f32 %v197, %v213
        %216 = vrot.lane.b32.xlu0 %v151, 126
        %v217 = vpop.permute.xlu0 %216
        %218 = vrot.lane.b32.xlu0 %v178, 126
        %v219 = vpop.permute.xlu0 %218
        %vm220 = vcmp.lt.s32.totalorder %v153, 126
        %v221 = vsel %vm220, %v217, %v219
        %v222 = vsel %vm220, %v219, %v217
        %v223 = vsel %vm167, 1, 0
        %v224 = vsel %vm168, 1, 0
        %vm225 = vcmp.eq.s32.totalorder %v223, 1
        %vm226 = vcmp.eq.s32.totalorder %v224, 1
        %v227 = vsel %vm225, %v221, -inf
        %v228 = vsel %vm226, %v222, -inf
        %v231 = vcombine.low %v227, %v228
        %v233 = vmax.f32 %v215, %v231
        %234 = vrot.lane.b32.xlu0 %v151, 2
        %v235 = vpop.permute.xlu0 %234
        %236 = vrot.lane.b32.xlu0 %v178, 2
        %v237 = vpop.permute.xlu0 %236
        %vm238 = vcmp.lt.s32.totalorder %v153, 2
        %v239 = vsel %vm238, %v235, %v237
        %v240 = vsel %vm238, %v237, %v235
        %v241 = vsel %vm169, 1, 0
        %v242 = vsel %vm170, 1, 0
        %vm243 = vcmp.eq.s32.totalorder %v241, 1
        %vm244 = vcmp.eq.s32.totalorder %v242, 1
        %v245 = vsel %vm243, %v240, -inf
        %v246 = vsel %vm244, %v239, -inf
        %v249 = vcombine.low %v245, %v246
        %v251 = vmax.f32 %v233, %v249
        %v253 = vcombine.high %v251, %v251
        %255 = vrot.lane.b32.xlu0 %v251, 112
        %v256 = vpop.permute.xlu0 %255
        %257 = vrot.lane.b32.xlu0 %v253, 112
        %v258 = vpop.permute.xlu0 %257
        %vm259 = vcmp.lt.s32.totalorder %v153, 112
        %v260 = vsel %vm259, %v256, %v258
        %v261 = vsel %vm259, %v258, %v256
        %v262 = vsel %vm163, 1, 0
        %v263 = vsel %vm164, 1, 0
        %vm264 = vcmp.eq.s32.totalorder %v262, 1
        %vm265 = vcmp.eq.s32.totalorder %v263, 1
        %v266 = vsel %vm264, %v260, -inf
        %v267 = vsel %vm265, %v261, -inf
        %v270 = vcombine.low %v266, %v267
        %v272 = vmax.f32 %v251, %v270
        %273 = vrot.lane.b32.xlu0 %v251, 16
        %v274 = vpop.permute.xlu0 %273
        %275 = vrot.lane.b32.xlu0 %v253, 16
        %v276 = vpop.permute.xlu0 %275
        %vm277 = vcmp.lt.s32.totalorder %v153, 16
        %v278 = vsel %vm277, %v274, %v276
        %v279 = vsel %vm277, %v276, %v274
        %v280 = vsel %vm165, 1, 0
        %v281 = vsel %vm166, 1, 0
        %vm282 = vcmp.eq.s32.totalorder %v280, 1
        %vm283 = vcmp.eq.s32.totalorder %v281, 1
        %v284 = vsel %vm282, %v279, -inf
        %v285 = vsel %vm283, %v278, -inf
        %v288 = vcombine.low %v284, %v285
        %v290 = vmax.f32 %v272, %v288
        %291 = vrot.lane.b32.xlu0 %v251, 96
        %v292 = vpop.permute.xlu0 %291
        %293 = vrot.lane.b32.xlu0 %v253, 96
        %v294 = vpop.permute.xlu0 %293
        %vm295 = vcmp.lt.s32.totalorder %v153, 96
        %v296 = vsel %vm295, %v292, %v294
        %v297 = vsel %vm295, %v294, %v292
        %v298 = vsel %vm171, 1, 0
        %v299 = vsel %vm172, 1, 0
        %vm300 = vcmp.eq.s32.totalorder %v298, 1
        %vm301 = vcmp.eq.s32.totalorder %v299, 1
        %v302 = vsel %vm300, %v296, -inf
        %v303 = vsel %vm301, %v297, -inf
        %v306 = vcombine.low %v302, %v303
        %v308 = vmax.f32 %v290, %v306
        %309 = vrot.lane.b32.xlu0 %v251, 32
        %v310 = vpop.permute.xlu0 %309
        %311 = vrot.lane.b32.xlu0 %v253, 32
        %v312 = vpop.permute.xlu0 %311
        %vm313 = vcmp.lt.s32.totalorder %v153, 32
        %v314 = vsel %vm313, %v310, %v312
        %v315 = vsel %vm313, %v312, %v310
        %v316 = vsel %vm173, 1, 0
        %v317 = vsel %vm174, 1, 0
        %vm318 = vcmp.eq.s32.totalorder %v316, 1
        %vm319 = vcmp.eq.s32.totalorder %v317, 1
        %v320 = vsel %vm318, %v315, -inf
        %v321 = vsel %vm319, %v314, -inf
        %v324 = vcombine.low %v320, %v321
        %v326 = vmax.f32 %v308, %v324
        %s327 = scalar_lea.vmem %s150, 16 [#allocation5]
        %328 = vst [vmem:[%s327] sm:$0xff] %v326
        %v330 = vcombine.high %v326, %v326
        %332 = vrot.lane.b32.xlu0 %v326, 127
        %v333 = vpop.permute.xlu0 %332
        %334 = vrot.lane.b32.xlu0 %v330, 127
        %v335 = vpop.permute.xlu0 %334
        %v336 = vsel %vm184, %v333, %v335
        %v337 = vsel %vm184, %v335, %v333
        %v338 = vsel %vm189, %v336, -inf
        %v339 = vsel %vm190, %v337, -inf
        %v342 = vcombine.low %v338, %v339
        %v344 = vmax.f32 %v326, %v342
        %345 = vrot.lane.b32.xlu0 %v326, 1
        %v346 = vpop.permute.xlu0 %345
        %347 = vrot.lane.b32.xlu0 %v330, 1
        %v348 = vpop.permute.xlu0 %347
        %v349 = vsel %vm202, %v346, %v348
        %v350 = vsel %vm202, %v348, %v346
        %v351 = vsel %vm207, %v350, -inf
        %v352 = vsel %vm208, %v349, -inf
        %v355 = vcombine.low %v351, %v352
        %v357 = vmax.f32 %v344, %v355
        %358 = vrot.lane.b32.xlu0 %v326, 126
        %v359 = vpop.permute.xlu0 %358
        %360 = vrot.lane.b32.xlu0 %v330, 126
        %v361 = vpop.permute.xlu0 %360
        %v362 = vsel %vm220, %v359, %v361
        %v363 = vsel %vm220, %v361, %v359
        %v364 = vsel %vm225, %v362, -inf
        %v365 = vsel %vm226, %v363, -inf
        %v368 = vcombine.low %v364, %v365
        %v370 = vmax.f32 %v357, %v368
        %371 = vrot.lane.b32.xlu0 %v326, 2
        %v372 = vpop.permute.xlu0 %371
        %373 = vrot.lane.b32.xlu0 %v330, 2
        %v374 = vpop.permute.xlu0 %373
        %v375 = vsel %vm238, %v372, %v374
        %v376 = vsel %vm238, %v374, %v372
        %v377 = vsel %vm243, %v376, -inf
        %v378 = vsel %vm244, %v375, -inf
        %v381 = vcombine.low %v377, %v378
        %v383 = vmax.f32 %v370, %v381
        %v385 = vcombine.high %v383, %v383
        %387 = vrot.lane.b32.xlu0 %v383, 112
        %v388 = vpop.permute.xlu0 %387
        %389 = vrot.lane.b32.xlu0 %v385, 112
        %v390 = vpop.permute.xlu0 %389
        %v391 = vsel %vm259, %v388, %v390
        %v392 = vsel %vm259, %v390, %v388
        %v393 = vsel %vm264, %v391, -inf
        %v394 = vsel %vm265, %v392, -inf
        %v397 = vcombine.low %v393, %v394
        %v399 = vmax.f32 %v383, %v397
        %400 = vrot.lane.b32.xlu0 %v383, 16
        %v401 = vpop.permute.xlu0 %400
        %402 = vrot.lane.b32.xlu0 %v385, 16
        %v403 = vpop.permute.xlu0 %402
        %v404 = vsel %vm277, %v401, %v403
        %v405 = vsel %vm277, %v403, %v401
        %v406 = vsel %vm282, %v405, -inf
        %v407 = vsel %vm283, %v404, -inf
        %v410 = vcombine.low %v406, %v407
        %v412 = vmax.f32 %v399, %v410
        %413 = vrot.lane.b32.xlu0 %v383, 96
        %v414 = vpop.permute.xlu0 %413
        %415 = vrot.lane.b32.xlu0 %v385, 96
        %v416 = vpop.permute.xlu0 %415
        %v417 = vsel %vm295, %v414, %v416
        %v418 = vsel %vm295, %v416, %v414
        %v419 = vsel %vm300, %v417, -inf
        %v420 = vsel %vm301, %v418, -inf
        %v423 = vcombine.low %v419, %v420
        %v425 = vmax.f32 %v412, %v423
        %426 = vrot.lane.b32.xlu0 %v383, 32
        %v427 = vpop.permute.xlu0 %426
        %428 = vrot.lane.b32.xlu0 %v385, 32
        %v429 = vpop.permute.xlu0 %428
        %v430 = vsel %vm313, %v427, %v429
        %v431 = vsel %vm313, %v429, %v427
        %v432 = vsel %vm318, %v431, -inf
        %v433 = vsel %vm319, %v430, -inf
        %v436 = vcombine.low %v432, %v433
        %v438 = vmax.f32 %v425, %v436
        %s439 = scalar_lea.vmem %s150, 8 [#allocation5]
        %440 = vst [vmem:[%s439] sm:$0xff] %v438
        %v442 = vcombine.high %v438, %v438
        %444 = vrot.lane.b32.xlu0 %v438, 127
        %v445 = vpop.permute.xlu0 %444
        %446 = vrot.lane.b32.xlu0 %v442, 127
        %v447 = vpop.permute.xlu0 %446
        %v448 = vsel %vm184, %v445, %v447
        %v449 = vsel %vm184, %v447, %v445
        %v450 = vsel %vm189, %v448, -inf
        %v451 = vsel %vm190, %v449, -inf
        %v454 = vcombine.low %v450, %v451
        %v456 = vmax.f32 %v438, %v454
        %457 = vrot.lane.b32.xlu0 %v438, 1
        %v458 = vpop.permute.xlu0 %457
        %459 = vrot.lane.b32.xlu0 %v442, 1
        %v460 = vpop.permute.xlu0 %459
        %v461 = vsel %vm202, %v458, %v460
        %v462 = vsel %vm202, %v460, %v458
        %v463 = vsel %vm207, %v462, -inf
        %v464 = vsel %vm208, %v461, -inf
        %v467 = vcombine.low %v463, %v464
        %v469 = vmax.f32 %v456, %v467
        %470 = vrot.lane.b32.xlu0 %v438, 126
        %v471 = vpop.permute.xlu0 %470
        %472 = vrot.lane.b32.xlu0 %v442, 126
        %v473 = vpop.permute.xlu0 %472
        %v474 = vsel %vm220, %v471, %v473
        %v475 = vsel %vm220, %v473, %v471
        %v476 = vsel %vm225, %v474, -inf
        %v477 = vsel %vm226, %v475, -inf
        %v480 = vcombine.low %v476, %v477
        %v482 = vmax.f32 %v469, %v480
        %483 = vrot.lane.b32.xlu0 %v438, 2
        %v484 = vpop.permute.xlu0 %483
        %485 = vrot.lane.b32.xlu0 %v442, 2
        %v486 = vpop.permute.xlu0 %485
        %v487 = vsel %vm238, %v484, %v486
        %v488 = vsel %vm238, %v486, %v484
        %v489 = vsel %vm243, %v488, -inf
        %v490 = vsel %vm244, %v487, -inf
        %v493 = vcombine.low %v489, %v490
        %v495 = vmax.f32 %v482, %v493
        %v497 = vcombine.high %v495, %v495
        %499 = vrot.lane.b32.xlu0 %v495, 112
        %v500 = vpop.permute.xlu0 %499
        %501 = vrot.lane.b32.xlu0 %v497, 112
        %v502 = vpop.permute.xlu0 %501
        %v503 = vsel %vm259, %v500, %v502
        %v504 = vsel %vm259, %v502, %v500
        %v505 = vsel %vm264, %v503, -inf
        %v506 = vsel %vm265, %v504, -inf
        %v509 = vcombine.low %v505, %v506
        %v511 = vmax.f32 %v495, %v509
        %512 = vrot.lane.b32.xlu0 %v495, 16
        %v513 = vpop.permute.xlu0 %512
        %514 = vrot.lane.b32.xlu0 %v497, 16
        %v515 = vpop.permute.xlu0 %514
        %v516 = vsel %vm277, %v513, %v515
        %v517 = vsel %vm277, %v515, %v513
        %v518 = vsel %vm282, %v517, -inf
        %v519 = vsel %vm283, %v516, -inf
        %v522 = vcombine.low %v518, %v519
        %v524 = vmax.f32 %v511, %v522
        %525 = vrot.lane.b32.xlu0 %v495, 96
        %v526 = vpop.permute.xlu0 %525
        %527 = vrot.lane.b32.xlu0 %v497, 96
        %v528 = vpop.permute.xlu0 %527
        %v529 = vsel %vm295, %v526, %v528
        %v530 = vsel %vm295, %v528, %v526
        %v531 = vsel %vm300, %v529, -inf
        %v532 = vsel %vm301, %v530, -inf
        %v535 = vcombine.low %v531, %v532
        %v537 = vmax.f32 %v524, %v535
        %538 = vrot.lane.b32.xlu0 %v495, 32
        %v539 = vpop.permute.xlu0 %538
        %540 = vrot.lane.b32.xlu0 %v497, 32
        %v541 = vpop.permute.xlu0 %540
        %v542 = vsel %vm313, %v539, %v541
        %v543 = vsel %vm313, %v541, %v539
        %v544 = vsel %vm318, %v543, -inf
        %v545 = vsel %vm319, %v542, -inf
        %v548 = vcombine.low %v544, %v545
        %v550 = vmax.f32 %v537, %v548
        %551 = vst [vmem:[%s150] sm:$0xff] %v550
        %s552 = sand.u32 %s68, 1
        %s553 = scalar_lea.sflag [#allocation4], %s552
        %s554 = sand.u32 %s68, 1
        %s555 = smul.addr %s554, 32
        %s556 = scalar_lea.vmem [#allocation5], %s555
        // Predicated region
        $region29: #{tpu_custom_call.1} parent=23 // pred_check
          %p557 = pneg %p78
        $region30: #{tpu_custom_call.1} parent=23 // pred_check_branch
          %559 = sbr.rel (%p557) target = $region32
        $region31: #{tpu_custom_call.1} parent=23 // pred_region
          %s561 = ssub.s32 512, 512
          %562 = vsyncadd %s553, %s561
          %s563 = smul.addr %s23, 2
          %s564 = smul.addr %s22, 8
          %s565 = sadd.s32 %s563, %s564
          %s566 = smul.addr %s565, 64
          %s567 = scalar_lea.hbm %s1, %s566
          %s568 = sshll.u32 %s556, 4
          %s569 = int_to_ptr.vmem [resolvable:$true] %s568
          %574 = dma.vmem_to_hbm [thread:$0]  %s569, 512, %s567, %s553, 128, 128, 8
        $region32: #{tpu_custom_call.1} parent=23 // pred_fallthru
          _
      $region24: #{tpu_custom_call.1} parent=5 // pred_fallthru
        _
      %p575 = scmp.le.s32.totalorder 2, %s13
      // Predicated region
      $region33: #{tpu_custom_call.1} parent=5 // pred_check
        %p576 = pneg %p575
      $region34: #{tpu_custom_call.1} parent=5 // pred_check_branch
        %578 = sbr.rel (%p576) target = $region36
      $region35: #{tpu_custom_call.1} parent=5 // pred_region
        %s579 = ssub.s32 %s13, 2
        // Predicated region
        $region37: #{tpu_custom_call.1} parent=35 // pred_check
          %p580 = pneg %p84
        $region38: #{tpu_custom_call.1} parent=35 // pred_check_branch
          %582 = sbr.rel (%p580) target = $region40
        $region39: #{tpu_custom_call.1} parent=35 // pred_region
          %s583 = sand.u32 %s69, 1
          %s584 = scalar_lea.sflag [#allocation4], %s583
          %s585 = sand.u32 %s69, 1
          %s586 = smul.addr %s585, 32
          %s587 = scalar_lea.vmem [#allocation5], %s586
          %588 = dma.done %s584, 512
        $region40: #{tpu_custom_call.1} parent=35 // pred_fallthru
          _
      $region36: #{tpu_custom_call.1} parent=5 // pred_fallthru
        _
    $region6: #{tpu_custom_call.1} parent=1 // loop_footer
      %s17 = sadd.s32 1, %s13
    $region7: #{tpu_custom_call.1} parent=1 // loop_footer_branch
      %12 = sbr.rel target = $region3
    $region8: #{tpu_custom_call.1} parent=1 // loop_exit
      _
    %589 = vsyncpa [#allocation3], 1
    %s590 = scalar_lea.sflag [#allocation3], 1
    %591 = vsyncpa %s590, 1
    %592 = vsyncpa [#allocation4], 1
    %s593 = scalar_lea.sflag [#allocation4], 1
    %594 = vsyncpa %s593, 1

</llo_original>
